<compile_context>
chip_gen: v7x
topology: tpu7x:2x2x1
jax: 0.10.0
libtpu: 0.0.40
codegen_flags: <defaults>
</compile_context>

<pallas_src>
import jax
import jax.numpy as jnp
from jax.experimental import pallas as pl
from jax.experimental.pallas import tpu as pltpu


def policy_head_kernel(x_ref, w0_ref, w1_ref, b0_ref, b1_ref,
                       fcw0_ref, fcw1_ref, fcb_ref, o_ref):
    # x_ref:    (TN, C, 81)  input tile (NCHW, HxW flattened; 81 on lanes)
    # w0_ref:   (1, C, 1)    1x1 conv weight (BN scale folded), out channel 0
    # w1_ref:   (1, C, 1)    1x1 conv weight, out channel 1
    # b0_ref:   (1, 1)       folded conv+BN bias, channel 0
    # b1_ref:   (1, 1)       folded conv+BN bias, channel 1
    # fcw0_ref: (81, 6)      fc weights for conv channel 0 (pre-transposed)
    # fcw1_ref: (81, 6)      fc weights for conv channel 1 (pre-transposed)
    # fcb_ref:  (1, 6)       fc bias
    # o_ref:    (TN, 6)      policy logits for this batch tile
    xf = x_ref[...].astype(jnp.float32)                      # (TN, C, 81)

    # 1x1 conv, 2 output channels: VPU broadcast-mul + sublane reduction over C.
    s0 = jnp.sum(xf * w0_ref[...], axis=1)                   # (TN, 81)
    s1 = jnp.sum(xf * w1_ref[...], axis=1)                   # (TN, 81)
    act0 = jnp.maximum(s0 + b0_ref[...], 0.0)                # folded BN bias + ReLU
    act1 = jnp.maximum(s1 + b1_ref[...], 0.0)

    # FC over the channel-major flatten: two 2-D MXU matmuls contracting the
    # lane dim (81); the result is already (TN, 6) -- no transpose, no relayout.
    y = (jnp.dot(act0, fcw0_ref[...], preferred_element_type=jnp.float32)
         + jnp.dot(act1, fcw1_ref[...], preferred_element_type=jnp.float32))
    o_ref[...] = (y + fcb_ref[...]).astype(o_ref.dtype)
    # NOTE: (TN, 6) stores are lane-masked, but output volume is trivial
    # (24 B/row); only worth restructuring if a store epilogue shows up.


def _vmem_capacity_bytes():
    """Per-core VMEM capacity; falls back to the smallest current part (v7x)."""
    try:
        cap = getattr(pltpu.get_tpu_info(), "vmem_capacity_bytes", None)
        if cap:
            return int(cap)
    except Exception:
        pass
    return 64 * 1024 * 1024


def _pick_batch_tile(n, c, itemsize, vmem_limit, max_tile_n):
    """Largest multiple-of-8 batch tile whose double-buffered x tile plus the
    f32 conv temporaries fit the VMEM budget, capped so the 1-D grid has at
    least two steps (v7x megacore) whenever the batch allows it."""
    lanes = 128                                    # 81 -> 128 lane padding in VMEM
    per_row = c * lanes * (2 * itemsize + 2 * 4)   # 2x-buffered input + 2 f32 temps
    budget = int(vmem_limit * 0.7)
    tn = max(8, min(max_tile_n, budget // per_row))
    tn = (tn // 8) * 8
    half = ((-(-n // 2)) + 7) // 8 * 8             # ceil(N/2) rounded up to 8
    if half < n:
        tn = min(tn, half)                         # guarantee >= 2 grid steps
    if tn >= n:
        tn = n                                     # single full block (always legal)
    return tn
    # NOTE: if tiny tiles were ever forced (tiny N, huge C), a deeper
    # pipeline_mode=pl.Buffered(3) on the x spec would be the fallback.


def policy_head_forward(x_nchw, params, *, max_tile_n=2048):
    """x_nchw: (N, planes, 9, 9) f32/bf16.  Returns (N, 6) f32 policy logits."""
    N, C, H, W = x_nchw.shape
    assert (H, W) == (9, 9), "PolicyHead expects 9x9 spatial input"
    P = H * W

    # ---- parameter glue (not the hot path): fold eval-mode BN into the conv ----
    eps = 1e-5
    scale = params["bn_gamma"] / jnp.sqrt(params["bn_var"] + eps)          # (2,)
    w_eff = (params["conv_w"].reshape(2, C) * scale[:, None]).astype(jnp.float32)
    b_eff = (scale * (params["conv_b"] - params["bn_mean"])
             + params["bn_beta"]).astype(jnp.float32)                      # (2,)
    w0 = w_eff[0].reshape(1, C, 1)
    w1 = w_eff[1].reshape(1, C, 1)
    b0 = b_eff[0].reshape(1, 1)
    b1 = b_eff[1].reshape(1, 1)

    fc_w = params["fc_w"].astype(jnp.float32)          # (6, 2*81), channel-major
    fcw0 = fc_w[:, :P].T                               # (81, 6): conv channel 0
    fcw1 = fc_w[:, P:].T                               # (81, 6): conv channel 1
    fcb = params["fc_b"].reshape(1, 6).astype(jnp.float32)

    x3 = x_nchw.reshape(N, C, P)
    if x3.dtype not in (jnp.float32, jnp.bfloat16):
        x3 = x3.astype(jnp.float32)
    itemsize = jnp.dtype(x3.dtype).itemsize

    # ---- generation-aware VMEM budget and batch tile ----
    vmem_cap = _vmem_capacity_bytes()                  # 64 MiB v7x, 128 MiB v5e/v6e
    vmem_limit = min(int(vmem_cap * 0.7), 100 * 1024 * 1024)
    tn = _pick_batch_tile(N, C, itemsize, vmem_limit, max_tile_n)
    grid = (pl.cdiv(N, tn),)

    flops = 4 * N * P * C + 2 * N * (2 * P) * 6
    bytes_accessed = (itemsize * N * C * P
                      + 4 * (2 * C + 2 + 2 * P * 6 + 6)
                      + 4 * N * 6)

    return pl.pallas_call(
        policy_head_kernel,
        out_shape=jax.ShapeDtypeStruct((N, 6), jnp.float32),
        grid=grid,
        in_specs=[
            pl.BlockSpec((tn, C, P), lambda i: (i, 0, 0)),   # x: tiled over batch
            pl.BlockSpec((1, C, 1), lambda i: (0, 0, 0)),    # conv w ch0 (resident)
            pl.BlockSpec((1, C, 1), lambda i: (0, 0, 0)),    # conv w ch1 (resident)
            pl.BlockSpec((1, 1), lambda i: (0, 0)),          # conv/BN bias ch0
            pl.BlockSpec((1, 1), lambda i: (0, 0)),          # conv/BN bias ch1
            pl.BlockSpec((P, 6), lambda i: (0, 0)),          # fc w ch0 (resident)
            pl.BlockSpec((P, 6), lambda i: (0, 0)),          # fc w ch1 (resident)
            pl.BlockSpec((1, 6), lambda i: (0, 0)),          # fc bias (resident)
        ],
        out_specs=pl.BlockSpec((tn, 6), lambda i: (i, 0)),
        compiler_params=pltpu.CompilerParams(
            dimension_semantics=("parallel",),
            vmem_limit_bytes=vmem_limit,
        ),
        cost_estimate=pl.CostEstimate(
            flops=flops, transcendentals=0, bytes_accessed=bytes_accessed),
    )(x3, w0, w1, b0, b1, fcw0, fcw1, fcb)


def reference_forward(x_nchw, params):
    """Plain-JAX reference mirroring the PyTorch module (eval-mode BN)."""
    conv_w = params["conv_w"].reshape(2, -1)
    conv = jnp.einsum("oc,nchw->nohw", conv_w, x_nchw.astype(jnp.float32)) \
        + params["conv_b"][None, :, None, None]
    eps = 1e-5
    scale = params["bn_gamma"] / jnp.sqrt(params["bn_var"] + eps)
    bn = scale[None, :, None, None] * (conv - params["bn_mean"][None, :, None, None]) \
        + params["bn_beta"][None, :, None, None]
    act = jnp.maximum(bn, 0.0)
    flat = act.reshape(act.shape[0], -1)          # channel-major flatten, like .view()
    return flat @ params["fc_w"].T + params["fc_b"]


def make_params(key, planes):
    ks = jax.random.split(key, 8)
    return {
        "conv_w": 0.1 * jax.random.normal(ks[0], (2, planes, 1, 1), jnp.float32),
        "conv_b": 0.1 * jax.random.normal(ks[1], (2,), jnp.float32),
        "bn_gamma": 1.0 + 0.1 * jax.random.normal(ks[2], (2,), jnp.float32),
        "bn_beta": 0.1 * jax.random.normal(ks[3], (2,), jnp.float32),
        "bn_mean": 0.1 * jax.random.normal(ks[4], (2,), jnp.float32),
        "bn_var": jnp.abs(1.0 + 0.1 * jax.random.normal(ks[5], (2,), jnp.float32)),
        "fc_w": 0.05 * jax.random.normal(ks[6], (6, 2 * 9 * 9), jnp.float32),
        "fc_b": 0.05 * jax.random.normal(ks[7], (6,), jnp.float32),
    }


if __name__ == "__main__":
    key = jax.random.PRNGKey(0)
    k_x1, k_p1, k_x2, k_p2 = jax.random.split(key, 4)

    # Case 1: evenly divided multi-step grid (pipelining + both-TC path on v7x).
    N1, C1 = 32, 32
    x1 = jax.random.normal(k_x1, (N1, C1, 9, 9), jnp.float32)
    p1 = make_params(k_p1, C1)
    out1 = jax.block_until_ready(policy_head_forward(x1, p1))
    ref1 = reference_forward(x1, p1)
    assert out1.shape == (N1, 6)
    assert jnp.allclose(out1, ref1, atol=5e-3, rtol=5e-3), (out1, ref1)

    # Case 2: ragged batch -> partial last block (masked output writes).
    N2, C2 = 20, 16
    x2 = jax.random.normal(k_x2, (N2, C2, 9, 9), jnp.float32)
    p2 = make_params(k_p2, C2)
    out2 = jax.block_until_ready(policy_head_forward(x2, p2))
    ref2 = reference_forward(x2, p2)
    assert out2.shape == (N2, 6)
    assert jnp.allclose(out2, ref2, atol=5e-3, rtol=5e-3), (out2, ref2)

    print("KERNEL_OK")
</pallas_src>

<mosaic_0001>
module attributes {stable_mosaic.version = 11 : i64} {
  func.func @policy_head_kernel(%arg0: i32, %arg1: memref<16x32x81xf32, #tpu.memory_space<vmem>>, %arg2: memref<1x32x1xf32, #tpu.memory_space<vmem>>, %arg3: memref<1x32x1xf32, #tpu.memory_space<vmem>>, %arg4: memref<1x1xf32, #tpu.memory_space<vmem>>, %arg5: memref<1x1xf32, #tpu.memory_space<vmem>>, %arg6: memref<81x6xf32, #tpu.memory_space<vmem>>, %arg7: memref<81x6xf32, #tpu.memory_space<vmem>>, %arg8: memref<1x6xf32, #tpu.memory_space<vmem>>, %arg9: memref<16x6xf32, #tpu.memory_space<vmem>>) attributes {dimension_semantics = [#tpu.dimension_semantics<parallel>], iteration_bounds = array<i64: 2>, scalar_prefetch = 0 : i64, scratch_operands = 0 : i64, tpu.core_type = #tpu.core_type<tc>, window_params = [{transform_indices = @transform_0, window_bounds = array<i64: 16, 32, 81>}, {pipeline_mode = #tpu.pipeline_mode<synchronous>, transform_indices = @transform_1, window_bounds = array<i64: 1, 32, 1>}, {pipeline_mode = #tpu.pipeline_mode<synchronous>, transform_indices = @transform_2, window_bounds = array<i64: 1, 32, 1>}, {pipeline_mode = #tpu.pipeline_mode<synchronous>, transform_indices = @transform_3, window_bounds = array<i64: 1, 1>}, {pipeline_mode = #tpu.pipeline_mode<synchronous>, transform_indices = @transform_4, window_bounds = array<i64: 1, 1>}, {pipeline_mode = #tpu.pipeline_mode<synchronous>, transform_indices = @transform_5, window_bounds = array<i64: 81, 6>}, {pipeline_mode = #tpu.pipeline_mode<synchronous>, transform_indices = @transform_6, window_bounds = array<i64: 81, 6>}, {pipeline_mode = #tpu.pipeline_mode<synchronous>, transform_indices = @transform_7, window_bounds = array<i64: 1, 6>}, {transform_indices = @transform_8, window_bounds = array<i64: 16, 6>}]} {
    %c0 = arith.constant 0 : index
    %c0_0 = arith.constant 0 : index
    %c0_1 = arith.constant 0 : index
    %0 = vector.load %arg1[%c0, %c0_0, %c0_1] : memref<16x32x81xf32, #tpu.memory_space<vmem>>, vector<16x32x81xf32>
    %c0_2 = arith.constant 0 : index
    %c0_3 = arith.constant 0 : index
    %c0_4 = arith.constant 0 : index
    %1 = vector.load %arg2[%c0_2, %c0_3, %c0_4] : memref<1x32x1xf32, #tpu.memory_space<vmem>>, vector<1x32x1xf32>
    %2 = vector.broadcast %1 : vector<1x32x1xf32> to vector<16x32x81xf32>
    %3 = arith.mulf %0, %2 : vector<16x32x81xf32>
    %cst = arith.constant dense<0.000000e+00> : vector<16x81xf32>
    %4 = vector.multi_reduction <add>, %3, %cst [1] : vector<16x32x81xf32> to vector<16x81xf32>
    %c0_5 = arith.constant 0 : index
    %c0_6 = arith.constant 0 : index
    %c0_7 = arith.constant 0 : index
    %5 = vector.load %arg3[%c0_5, %c0_6, %c0_7] : memref<1x32x1xf32, #tpu.memory_space<vmem>>, vector<1x32x1xf32>
    %6 = vector.broadcast %5 : vector<1x32x1xf32> to vector<16x32x81xf32>
    %7 = arith.mulf %0, %6 : vector<16x32x81xf32>
    %cst_8 = arith.constant dense<0.000000e+00> : vector<16x81xf32>
    %8 = vector.multi_reduction <add>, %7, %cst_8 [1] : vector<16x32x81xf32> to vector<16x81xf32>
    %c0_9 = arith.constant 0 : index
    %c0_10 = arith.constant 0 : index
    %9 = vector.load %arg4[%c0_9, %c0_10] : memref<1x1xf32, #tpu.memory_space<vmem>>, vector<1x1xf32>
    %10 = vector.broadcast %9 : vector<1x1xf32> to vector<16x81xf32>
    %11 = arith.addf %4, %10 : vector<16x81xf32>
    %cst_11 = arith.constant 0.000000e+00 : f32
    %12 = vector.broadcast %cst_11 : f32 to vector<16x81xf32>
    %13 = arith.maximumf %11, %12 : vector<16x81xf32>
    %c0_12 = arith.constant 0 : index
    %c0_13 = arith.constant 0 : index
    %14 = vector.load %arg5[%c0_12, %c0_13] : memref<1x1xf32, #tpu.memory_space<vmem>>, vector<1x1xf32>
    %15 = vector.broadcast %14 : vector<1x1xf32> to vector<16x81xf32>
    %16 = arith.addf %8, %15 : vector<16x81xf32>
    %cst_14 = arith.constant 0.000000e+00 : f32
    %17 = vector.broadcast %cst_14 : f32 to vector<16x81xf32>
    %18 = arith.maximumf %16, %17 : vector<16x81xf32>
    %c0_15 = arith.constant 0 : index
    %c0_16 = arith.constant 0 : index
    %19 = vector.load %arg6[%c0_15, %c0_16] : memref<81x6xf32, #tpu.memory_space<vmem>>, vector<81x6xf32>
    %cst_17 = arith.constant dense<0.000000e+00> : vector<16x6xf32>
    %20 = tpu.matmul %13, %19, %cst_17 {dimension_numbers = #tpu.dot_dimension_numbers<[1], [0], [0], [1], [0, 0, 1, 1], [], []>} : vector<16x81xf32>, vector<81x6xf32>, vector<16x6xf32> -> vector<16x6xf32>
    %c0_18 = arith.constant 0 : index
    %c0_19 = arith.constant 0 : index
    %21 = vector.load %arg7[%c0_18, %c0_19] : memref<81x6xf32, #tpu.memory_space<vmem>>, vector<81x6xf32>
    %cst_20 = arith.constant dense<0.000000e+00> : vector<16x6xf32>
    %22 = tpu.matmul %18, %21, %cst_20 {dimension_numbers = #tpu.dot_dimension_numbers<[1], [0], [0], [1], [0, 0, 1, 1], [], []>} : vector<16x81xf32>, vector<81x6xf32>, vector<16x6xf32> -> vector<16x6xf32>
    %23 = arith.addf %20, %22 : vector<16x6xf32>
    %c0_21 = arith.constant 0 : index
    %c0_22 = arith.constant 0 : index
    %24 = vector.load %arg8[%c0_21, %c0_22] : memref<1x6xf32, #tpu.memory_space<vmem>>, vector<1x6xf32>
    %25 = vector.broadcast %24 : vector<1x6xf32> to vector<16x6xf32>
    %26 = arith.addf %23, %25 : vector<16x6xf32>
    %c0_23 = arith.constant 0 : index
    %c0_24 = arith.constant 0 : index
    %27 = vector.load %arg9[%c0_23, %c0_24] : memref<16x6xf32, #tpu.memory_space<vmem>>, vector<16x6xf32>
    tpu.vector_store %arg9[%c0_23, %c0_24], %26 {strides = array<i32>} : memref<16x6xf32, #tpu.memory_space<vmem>>, vector<16x6xf32>,
    return
  }
  func.func @transform_0(%arg0: i32) -> (i32, i32, i32) {
    %c0_i32 = arith.constant 0 : i32
    %c0_i32_0 = arith.constant 0 : i32
    %c0_i32_1 = arith.constant 0 : i32
    return %arg0, %c0_i32, %c0_i32_0 : i32, i32, i32
  }
  func.func @transform_1(%arg0: i32) -> (i32, i32, i32) {
    %c0_i32 = arith.constant 0 : i32
    %c0_i32_0 = arith.constant 0 : i32
    %c0_i32_1 = arith.constant 0 : i32
    %c0_i32_2 = arith.constant 0 : i32
    return %c0_i32, %c0_i32_0, %c0_i32_1 : i32, i32, i32
  }
  func.func @transform_2(%arg0: i32) -> (i32, i32, i32) {
    %c0_i32 = arith.constant 0 : i32
    %c0_i32_0 = arith.constant 0 : i32
    %c0_i32_1 = arith.constant 0 : i32
    %c0_i32_2 = arith.constant 0 : i32
    return %c0_i32, %c0_i32_0, %c0_i32_1 : i32, i32, i32
  }
  func.func @transform_3(%arg0: i32) -> (i32, i32) {
    %c0_i32 = arith.constant 0 : i32
    %c0_i32_0 = arith.constant 0 : i32
    %c0_i32_1 = arith.constant 0 : i32
    return %c0_i32, %c0_i32_0 : i32, i32
  }
  func.func @transform_4(%arg0: i32) -> (i32, i32) {
    %c0_i32 = arith.constant 0 : i32
    %c0_i32_0 = arith.constant 0 : i32
    %c0_i32_1 = arith.constant 0 : i32
    return %c0_i32, %c0_i32_0 : i32, i32
  }
  func.func @transform_5(%arg0: i32) -> (i32, i32) {
    %c0_i32 = arith.constant 0 : i32
    %c0_i32_0 = arith.constant 0 : i32
    %c0_i32_1 = arith.constant 0 : i32
    return %c0_i32, %c0_i32_0 : i32, i32
  }
  func.func @transform_6(%arg0: i32) -> (i32, i32) {
    %c0_i32 = arith.constant 0 : i32
    %c0_i32_0 = arith.constant 0 : i32
    %c0_i32_1 = arith.constant 0 : i32
    return %c0_i32, %c0_i32_0 : i32, i32
  }
  func.func @transform_7(%arg0: i32) -> (i32, i32) {
    %c0_i32 = arith.constant 0 : i32
    %c0_i32_0 = arith.constant 0 : i32
    %c0_i32_1 = arith.constant 0 : i32
    return %c0_i32, %c0_i32_0 : i32, i32
  }
  func.func @transform_8(%arg0: i32) -> (i32, i32) {
    %c0_i32 = arith.constant 0 : i32
    %c0_i32_0 = arith.constant 0 : i32
    return %arg0, %c0_i32 : i32, i32
  }
}

</mosaic_0001>

<llo_original>
// kernel: tpu_custom_call.1
$region0: #{tpu_custom_call.1}
  #allocation0 [shape = 'u32[]', space=smem, size = 0x4, offset = 0x4, fixed_abs, tag = 'smem constant byte address 0x4 - core index']
  #allocation1 [shape = 'u32[144,128]{1,0:T(1,128)}', space=vmem, size = 0x12000, scoped, tag = 'internal scratch']
  #allocation2 [shape = 'f32[1,1]{1,0:T(1,128)S(1)}', space=vmem, size = 0x200, scoped, tag = 'scoped memory for tpu_custom_call.1']
  #allocation3 [shape = 'f32[1,1]{1,0:T(1,128)S(1)}', space=vmem, size = 0x200, scoped, tag = 'scoped memory for tpu_custom_call.1']
  %s0 = inlined_call_operand.hbm [shape: f32[32,32,81], index: 0, kind: input, shape index: {}]
  %s1 = inlined_call_operand.vmem [shape: f32[1,32,1], index: 1, kind: input, shape index: {}]
  %s2 = inlined_call_operand.vmem [shape: f32[1,32,1], index: 2, kind: input, shape index: {}]
  %s3 = inlined_call_operand.<no memory space> [shape: f32[1,1], index: 3, kind: input, shape index: {}]
  %s4 = inlined_call_operand.<no memory space> [shape: f32[1,1], index: 4, kind: input, shape index: {}]
  %s5 = inlined_call_operand.vmem [shape: f32[81,6], index: 5, kind: input, shape index: {}]
  %s6 = inlined_call_operand.vmem [shape: f32[81,6], index: 6, kind: input, shape index: {}]
  %s7 = inlined_call_operand.vmem [shape: f32[1,6], index: 7, kind: input, shape index: {}]
  %s8 = inlined_call_operand.vmem [shape: f32[32,6], index: 8, kind: output, shape index: {}]
  %s9 = sld [smem:[#allocation0]]
  $region69: #{tpu_custom_call.1} parent=0
    _
  %s11 = ssub.s32 1, %s9
  %s12 = scalar_select 0, %s11, %s9
  %v13 = vstv %s3
  %14 = vst [vmem:[#allocation2] sm:$0x1] %v13
  %v15 = vstv %s4
  %16 = vst [vmem:[#allocation3] sm:$0x1] %v15
  $region1: #{tpu_custom_call.1} parent=0
    #allocation4 [shape = 'u8[524288]{0}', space=vmem, size = 0x80000, scoped, tag = 'input window, operand 0']
    #allocation5 [shape = 's32[2]{0}', space=sflag, size = 0x8, scoped, tag = 'scoped memory for tpu_custom_call.1']
    %17 = vsyncpa [#allocation5], 0
    %s18 = scalar_lea.sflag [#allocation5], 1
    %19 = vsyncpa %s18, 0
    loop: start=0, step=1, limit=4
    $region2: #{tpu_custom_call.1} parent=1 // loop_pre_header
      _
    $region3: #{tpu_custom_call.1} parent=1 // loop_header
      %s21 = sphi 0, %s25
      %p22 = scmp.ge.s32.totalorder %s21, 4
      %s31 = sphi 0, %s33
      %s34 = sphi 0, %s31
      %s35 = sphi 0, %s34
      %s51 = sphi 0, %s35
      %s55 = sphi 0, %s55
      %s57 = sphi 0, %s55
      %s58 = sphi 0, %s57
      %s72 = sphi 0, %s58
      %s76 = sphi 0, %s76
      %s78 = sphi 0, %s76
      %s79 = sphi 0, %s78
      %s93 = sphi 0, %s79
      %s97 = sphi 0, %s97
      %s99 = sphi 0, %s97
      %s100 = sphi 0, %s99
      %s114 = sphi 0, %s100
      %s118 = sphi 0, %s118
      %s120 = sphi 0, %s118
      %s121 = sphi 0, %s120
      %s135 = sphi 0, %s121
      %s139 = sphi 0, %s139
      %s141 = sphi 0, %s139
      %s142 = sphi 0, %s141
      %s156 = sphi 0, %s142
      %s160 = sphi 0, %s160
      %s162 = sphi 0, %s160
      %s163 = sphi 0, %s162
      %s177 = sphi 0, %s163
      %s181 = sphi 0, %s181
      %s183 = sphi 0, %s181
      %s184 = sphi 0, %s183
      %s198 = sphi 0, %s184
      %s204 = sphi 0, %s206
      %s207 = sphi 0, %s204
      %s208 = sphi 0, %s207
      %s224 = sphi 0, %s208
    $region4: #{tpu_custom_call.1} parent=1 // loop_header_branch
      %24 = sbr.rel (%p22) target = $region8
    $region5: #{tpu_custom_call.1} parent=1 // loop_body
      %s26 = ssub.s32 %s21, 1
      %s27 = ssub.s32 %s21, 2
      %s28 = sadd.s32 %s21, 1
      %s29 = ssub.s32 %s21, %s28
      %p30 = scmp.eq.s32.totalorder %s29, 0
      %s32 = sadd.s32 %s31, 1
      %s33 = scalar_select %p30, %s31, %s32
      %p36 = pneg %p30
      %p37 = scmp.eq.s32.totalorder %s21, 1
      %p38 = por %p36, %p37
      %p39 = scmp.ne.s32.totalorder %s31, %s34
      %p40 = scmp.eq.s32.totalorder %s21, 0
      %p41 = por %p39, %p40
      %p42 = scmp.ne.s32.totalorder %s31, %s34
      %p43 = scmp.eq.s32.totalorder %s26, 1
      %p44 = por %p42, %p43
      %p45 = scmp.ne.s32.totalorder %s34, %s35
      %p46 = scmp.eq.s32.totalorder %s26, 0
      %p47 = por %p45, %p46
      %p48 = scmp.ne.s32.totalorder %s34, %s35
      %p49 = scmp.eq.s32.totalorder %s27, 1
      %p50 = por %p48, %p49
      %p52 = scmp.ne.s32.totalorder %s35, %s51
      %p53 = scmp.eq.s32.totalorder %s27, 0
      %p54 = por %p52, %p53
      %s56 = sadd.s32 %s55, 1
      %p59 = scmp.eq.s32.totalorder %s21, 1
      %p60 = scmp.ne.s32.totalorder %s55, %s57
      %p61 = scmp.eq.s32.totalorder %s21, 0
      %p62 = por %p60, %p61
      %p63 = scmp.ne.s32.totalorder %s55, %s57
      %p64 = scmp.eq.s32.totalorder %s26, 1
      %p65 = por %p63, %p64
      %p66 = scmp.ne.s32.totalorder %s57, %s58
      %p67 = scmp.eq.s32.totalorder %s26, 0
      %p68 = por %p66, %p67
      %p69 = scmp.ne.s32.totalorder %s57, %s58
      %p70 = scmp.eq.s32.totalorder %s27, 1
      %p71 = por %p69, %p70
      %p73 = scmp.ne.s32.totalorder %s58, %s72
      %p74 = scmp.eq.s32.totalorder %s27, 0
      %p75 = por %p73, %p74
      %s77 = sadd.s32 %s76, 1
      %p80 = scmp.eq.s32.totalorder %s21, 1
      %p81 = scmp.ne.s32.totalorder %s76, %s78
      %p82 = scmp.eq.s32.totalorder %s21, 0
      %p83 = por %p81, %p82
      %p84 = scmp.ne.s32.totalorder %s76, %s78
      %p85 = scmp.eq.s32.totalorder %s26, 1
      %p86 = por %p84, %p85
      %p87 = scmp.ne.s32.totalorder %s78, %s79
      %p88 = scmp.eq.s32.totalorder %s26, 0
      %p89 = por %p87, %p88
      %p90 = scmp.ne.s32.totalorder %s78, %s79
      %p91 = scmp.eq.s32.totalorder %s27, 1
      %p92 = por %p90, %p91
      %p94 = scmp.ne.s32.totalorder %s79, %s93
      %p95 = scmp.eq.s32.totalorder %s27, 0
      %p96 = por %p94, %p95
      %s98 = sadd.s32 %s97, 1
      %p101 = scmp.eq.s32.totalorder %s21, 1
      %p102 = scmp.ne.s32.totalorder %s97, %s99
      %p103 = scmp.eq.s32.totalorder %s21, 0
      %p104 = por %p102, %p103
      %p105 = scmp.ne.s32.totalorder %s97, %s99
      %p106 = scmp.eq.s32.totalorder %s26, 1
      %p107 = por %p105, %p106
      %p108 = scmp.ne.s32.totalorder %s99, %s100
      %p109 = scmp.eq.s32.totalorder %s26, 0
      %p110 = por %p108, %p109
      %p111 = scmp.ne.s32.totalorder %s99, %s100
      %p112 = scmp.eq.s32.totalorder %s27, 1
      %p113 = por %p111, %p112
      %p115 = scmp.ne.s32.totalorder %s100, %s114
      %p116 = scmp.eq.s32.totalorder %s27, 0
      %p117 = por %p115, %p116
      %s119 = sadd.s32 %s118, 1
      %p122 = scmp.eq.s32.totalorder %s21, 1
      %p123 = scmp.ne.s32.totalorder %s118, %s120
      %p124 = scmp.eq.s32.totalorder %s21, 0
      %p125 = por %p123, %p124
      %p126 = scmp.ne.s32.totalorder %s118, %s120
      %p127 = scmp.eq.s32.totalorder %s26, 1
      %p128 = por %p126, %p127
      %p129 = scmp.ne.s32.totalorder %s120, %s121
      %p130 = scmp.eq.s32.totalorder %s26, 0
      %p131 = por %p129, %p130
      %p132 = scmp.ne.s32.totalorder %s120, %s121
      %p133 = scmp.eq.s32.totalorder %s27, 1
      %p134 = por %p132, %p133
      %p136 = scmp.ne.s32.totalorder %s121, %s135
      %p137 = scmp.eq.s32.totalorder %s27, 0
      %p138 = por %p136, %p137
      %s140 = sadd.s32 %s139, 1
      %p143 = scmp.eq.s32.totalorder %s21, 1
      %p144 = scmp.ne.s32.totalorder %s139, %s141
      %p145 = scmp.eq.s32.totalorder %s21, 0
      %p146 = por %p144, %p145
      %p147 = scmp.ne.s32.totalorder %s139, %s141
      %p148 = scmp.eq.s32.totalorder %s26, 1
      %p149 = por %p147, %p148
      %p150 = scmp.ne.s32.totalorder %s141, %s142
      %p151 = scmp.eq.s32.totalorder %s26, 0
      %p152 = por %p150, %p151
      %p153 = scmp.ne.s32.totalorder %s141, %s142
      %p154 = scmp.eq.s32.totalorder %s27, 1
      %p155 = por %p153, %p154
      %p157 = scmp.ne.s32.totalorder %s142, %s156
      %p158 = scmp.eq.s32.totalorder %s27, 0
      %p159 = por %p157, %p158
      %s161 = sadd.s32 %s160, 1
      %p164 = scmp.eq.s32.totalorder %s21, 1
      %p165 = scmp.ne.s32.totalorder %s160, %s162
      %p166 = scmp.eq.s32.totalorder %s21, 0
      %p167 = por %p165, %p166
      %p168 = scmp.ne.s32.totalorder %s160, %s162
      %p169 = scmp.eq.s32.totalorder %s26, 1
      %p170 = por %p168, %p169
      %p171 = scmp.ne.s32.totalorder %s162, %s163
      %p172 = scmp.eq.s32.totalorder %s26, 0
      %p173 = por %p171, %p172
      %p174 = scmp.ne.s32.totalorder %s162, %s163
      %p175 = scmp.eq.s32.totalorder %s27, 1
      %p176 = por %p174, %p175
      %p178 = scmp.ne.s32.totalorder %s163, %s177
      %p179 = scmp.eq.s32.totalorder %s27, 0
      %p180 = por %p178, %p179
      %s182 = sadd.s32 %s181, 1
      %p185 = scmp.eq.s32.totalorder %s21, 1
      %p186 = scmp.ne.s32.totalorder %s181, %s183
      %p187 = scmp.eq.s32.totalorder %s21, 0
      %p188 = por %p186, %p187
      %p189 = scmp.ne.s32.totalorder %s181, %s183
      %p190 = scmp.eq.s32.totalorder %s26, 1
      %p191 = por %p189, %p190
      %p192 = scmp.ne.s32.totalorder %s183, %s184
      %p193 = scmp.eq.s32.totalorder %s26, 0
      %p194 = por %p192, %p193
      %p195 = scmp.ne.s32.totalorder %s183, %s184
      %p196 = scmp.eq.s32.totalorder %s27, 1
      %p197 = por %p195, %p196
      %p199 = scmp.ne.s32.totalorder %s184, %s198
      %p200 = scmp.eq.s32.totalorder %s27, 0
      %p201 = por %p199, %p200
      %s202 = ssub.s32 %s21, %s28
      %p203 = scmp.eq.s32.totalorder %s202, 0
      %s205 = sadd.s32 %s204, 1
      %s206 = scalar_select %p203, %s204, %s205
      %p209 = pneg %p203
      %p210 = scmp.eq.s32.totalorder %s21, 1
      %p211 = por %p209, %p210
      %p212 = scmp.ne.s32.totalorder %s204, %s207
      %p213 = scmp.eq.s32.totalorder %s21, 0
      %p214 = por %p212, %p213
      %p215 = scmp.ne.s32.totalorder %s204, %s207
      %p216 = scmp.eq.s32.totalorder %s26, 1
      %p217 = por %p215, %p216
      %p218 = scmp.ne.s32.totalorder %s207, %s208
      %p219 = scmp.eq.s32.totalorder %s26, 0
      %p220 = por %p218, %p219
      %p221 = scmp.ne.s32.totalorder %s207, %s208
      %p222 = scmp.eq.s32.totalorder %s27, 1
      %p223 = por %p221, %p222
      %p225 = scmp.ne.s32.totalorder %s208, %s224
      %p226 = scmp.eq.s32.totalorder %s27, 0
      %p227 = por %p225, %p226
      %p228 = scmp.le.s32.totalorder 1, %s21
      %p229 = scmp.lt.s32.totalorder %s21, 3
      %p230 = pnand %p228, %p229
      %p231 = pneg %p230
      // Predicated region
      $region9: #{tpu_custom_call.1} parent=5 // pred_check
        _
      $region10: #{tpu_custom_call.1} parent=5 // pred_check_branch
        %233 = sbr.rel (%p230) target = $region12
      $region11: #{tpu_custom_call.1} parent=5 // pred_region
        %s234 = ssub.s32 %s21, 1
        // Predicated region
        $region13: #{tpu_custom_call.1} parent=11 // pred_check
          %p235 = pneg %p68
        $region14: #{tpu_custom_call.1} parent=11 // pred_check_branch
          %237 = sbr.rel (%p235) target = $region16
        $region15: #{tpu_custom_call.1} parent=11 // pred_region
          _
        $region16: #{tpu_custom_call.1} parent=11 // pred_fallthru
          _
        // Predicated region
        $region17: #{tpu_custom_call.1} parent=11 // pred_check
          %p238 = pneg %p89
        $region18: #{tpu_custom_call.1} parent=11 // pred_check_branch
          %240 = sbr.rel (%p238) target = $region20
        $region19: #{tpu_custom_call.1} parent=11 // pred_region
          _
        $region20: #{tpu_custom_call.1} parent=11 // pred_fallthru
          _
        // Predicated region
        $region21: #{tpu_custom_call.1} parent=11 // pred_check
          %p241 = pneg %p110
        $region22: #{tpu_custom_call.1} parent=11 // pred_check_branch
          %243 = sbr.rel (%p241) target = $region24
        $region23: #{tpu_custom_call.1} parent=11 // pred_region
          _
        $region24: #{tpu_custom_call.1} parent=11 // pred_fallthru
          _
        // Predicated region
        $region25: #{tpu_custom_call.1} parent=11 // pred_check
          %p244 = pneg %p131
        $region26: #{tpu_custom_call.1} parent=11 // pred_check_branch
          %246 = sbr.rel (%p244) target = $region28
        $region27: #{tpu_custom_call.1} parent=11 // pred_region
          _
        $region28: #{tpu_custom_call.1} parent=11 // pred_fallthru
          _
        // Predicated region
        $region29: #{tpu_custom_call.1} parent=11 // pred_check
          %p247 = pneg %p152
        $region30: #{tpu_custom_call.1} parent=11 // pred_check_branch
          %249 = sbr.rel (%p247) target = $region32
        $region31: #{tpu_custom_call.1} parent=11 // pred_region
          _
        $region32: #{tpu_custom_call.1} parent=11 // pred_fallthru
          _
        // Predicated region
        $region33: #{tpu_custom_call.1} parent=11 // pred_check
          %p250 = pneg %p173
        $region34: #{tpu_custom_call.1} parent=11 // pred_check_branch
          %252 = sbr.rel (%p250) target = $region36
        $region35: #{tpu_custom_call.1} parent=11 // pred_region
          _
        $region36: #{tpu_custom_call.1} parent=11 // pred_fallthru
          _
        // Predicated region
        $region37: #{tpu_custom_call.1} parent=11 // pred_check
          %p253 = pneg %p194
        $region38: #{tpu_custom_call.1} parent=11 // pred_check_branch
          %255 = sbr.rel (%p253) target = $region40
        $region39: #{tpu_custom_call.1} parent=11 // pred_region
          _
        $region40: #{tpu_custom_call.1} parent=11 // pred_fallthru
          _
      $region12: #{tpu_custom_call.1} parent=5 // pred_fallthru
        _
      %p256 = scmp.lt.s32.totalorder %s21, 2
      // Predicated region
      $region41: #{tpu_custom_call.1} parent=5 // pred_check
        %p257 = pneg %p256
      $region42: #{tpu_custom_call.1} parent=5 // pred_check_branch
        %259 = sbr.rel (%p257) target = $region44
      $region43: #{tpu_custom_call.1} parent=5 // pred_region
        // Predicated region
        $region45: #{tpu_custom_call.1} parent=43 // pred_check
          %p260 = pneg %p41
        $region46: #{tpu_custom_call.1} parent=43 // pred_check_branch
          %262 = sbr.rel (%p260) target = $region48
        $region47: #{tpu_custom_call.1} parent=43 // pred_region
          %s263 = sand.u32 %s31, 1
          %s264 = scalar_lea.sflag [#allocation5], %s263
          %s265 = sand.u32 %s31, 1
          %s266 = smul.addr %s265, 512
          %s267 = scalar_lea.vmem [#allocation4], %s266
          %s268 = smul.u32 16, %s21
          %s270 = ssub.s32 8192, 8192
          %271 = vsyncadd %s264, %s270
          %s272 = smul.addr %s268, 4
          %s273 = smul.addr %s272, 128
          %s274 = scalar_lea.hbm %s0, %s273
          %s275 = sshll.u32 %s267, 4
          %s276 = int_to_ptr.vmem [resolvable:$true] %s275
          %281 = dma.hbm_to_vmem [thread:$0]  %s274, 8192, %s276, %s264, 128, 128, 8
        $region48: #{tpu_custom_call.1} parent=43 // pred_fallthru
          _
      $region44: #{tpu_custom_call.1} parent=5 // pred_fallthru
        _
      %p282 = scmp.le.s32.totalorder 1, %s21
      %p283 = scmp.lt.s32.totalorder %s21, 3
      %p284 = pnand %p282, %p283
      %p285 = pneg %p284
      // Predicated region
      $region49: #{tpu_custom_call.1} parent=5 // pred_check
        _
      $region50: #{tpu_custom_call.1} parent=5 // pred_check_branch
        %287 = sbr.rel (%p284) target = $region52
      $region51: #{tpu_custom_call.1} parent=5 // pred_region
        %s288 = ssub.s32 %s21, 1
        %s289 = sand.u32 %s34, 1
        %s290 = scalar_lea.sflag [#allocation5], %s289
        %s291 = sand.u32 %s34, 1
        %s292 = smul.addr %s291, 512
        %s293 = scalar_lea.vmem [#allocation4], %s292
        // Predicated region
        $region53: #{tpu_custom_call.1} parent=51 // pred_check
          %p294 = pneg %p47
        $region54: #{tpu_custom_call.1} parent=51 // pred_check_branch
          %296 = sbr.rel (%p294) target = $region56
        $region55: #{tpu_custom_call.1} parent=51 // pred_region
          %297 = dma.done %s290, 8192
        $region56: #{tpu_custom_call.1} parent=51 // pred_fallthru
          _
        %s298 = sand.u32 %s34, 1
        %s299 = scalar_lea.sflag [#allocation5], %s298
        %s300 = sand.u32 %s34, 1
        %s301 = smul.addr %s300, 512
        %s302 = scalar_lea.vmem [#allocation4], %s301
        %p303 = pneg %p47
        %p304 = pneg %p44
        %p305 = pneg %p68
        %p306 = pneg %p65
        %p307 = pneg %p89
        %p308 = pneg %p86
        %p309 = pneg %p110
        %p310 = pneg %p107
        %p311 = pneg %p131
        %p312 = pneg %p128
        %p313 = pneg %p152
        %p314 = pneg %p149
        %p315 = pneg %p173
        %p316 = pneg %p170
        %p317 = pneg %p194
        %p318 = pneg %p191
        %p319 = pneg %p220
        %p320 = pneg %p217
        %s321 = smul.u32 2, %s26
        %p322 = scmp.lt.s32.totalorder %s321, 3
        %s323 = scalar_select %p322, %s321, 3
        %s324 = smul.addr %s323, 8
        %s325 = scalar_lea.vmem %s8, %s324
        %s326 = smul.u32 16, %s26
        %s327 = smul.u32 2, %s26
        %p328 = scmp.lt.s32.totalorder %s327, 3
        %s329 = scalar_select %p328, %s327, 3
        %s330 = smul.addr %s329, 8
        %s331 = scalar_lea.vmem %s8, %s330
        %s332 = smul.u32 2, %s26
        %v333 = vld [vmem:[%s293] sm:$0xff]
        %v334 = vld [vmem:[%s293 + $0x8] sm:$0xff]
        %v335 = vld [vmem:[%s293 + $0x10] sm:$0xff]
        %v336 = vld [vmem:[%s293 + $0x18] sm:$0xff]
        %v337 = vld [vmem:[%s293 + $0x20] sm:$0xff]
        %v338 = vld [vmem:[%s293 + $0x28] sm:$0xff]
        %v339 = vld [vmem:[%s293 + $0x30] sm:$0xff]
        %v340 = vld [vmem:[%s293 + $0x38] sm:$0xff]
        %v341 = vld [vmem:[%s293 + $0x40] sm:$0xff]
        %v342 = vld [vmem:[%s293 + $0x48] sm:$0xff]
        %v343 = vld [vmem:[%s293 + $0x50] sm:$0xff]
        %v344 = vld [vmem:[%s293 + $0x58] sm:$0xff]
        %v345 = vld [vmem:[%s293 + $0x60] sm:$0xff]
        %v346 = vld [vmem:[%s293 + $0x68] sm:$0xff]
        %v347 = vld [vmem:[%s293 + $0x70] sm:$0xff]
        %v348 = vld [vmem:[%s293 + $0x78] sm:$0xff]
        %v349 = vld [vmem:[%s293 + $0x80] sm:$0xff]
        %v350 = vld [vmem:[%s293 + $0x88] sm:$0xff]
        %v351 = vld [vmem:[%s293 + $0x90] sm:$0xff]
        %v352 = vld [vmem:[%s293 + $0x98] sm:$0xff]
        %v353 = vld [vmem:[%s293 + $0xa0] sm:$0xff]
        %v354 = vld [vmem:[%s293 + $0xa8] sm:$0xff]
        %v355 = vld [vmem:[%s293 + $0xb0] sm:$0xff]
        %v356 = vld [vmem:[%s293 + $0xb8] sm:$0xff]
        %v357 = vld [vmem:[%s293 + $0xc0] sm:$0xff]
        %v358 = vld [vmem:[%s293 + $0xc8] sm:$0xff]
        %v359 = vld [vmem:[%s293 + $0xd0] sm:$0xff]
        %v360 = vld [vmem:[%s293 + $0xd8] sm:$0xff]
        %v361 = vld [vmem:[%s293 + $0xe0] sm:$0xff]
        %v362 = vld [vmem:[%s293 + $0xe8] sm:$0xff]
        %v363 = vld [vmem:[%s293 + $0xf0] sm:$0xff]
        %v364 = vld [vmem:[%s293 + $0xf8] sm:$0xff]
        %v365 = vld [vmem:[%s293 + $0x100] sm:$0xff]
        %v366 = vld [vmem:[%s293 + $0x108] sm:$0xff]
        %v367 = vld [vmem:[%s293 + $0x110] sm:$0xff]
        %v368 = vld [vmem:[%s293 + $0x118] sm:$0xff]
        %v369 = vld [vmem:[%s293 + $0x120] sm:$0xff]
        %v370 = vld [vmem:[%s293 + $0x128] sm:$0xff]
        %v371 = vld [vmem:[%s293 + $0x130] sm:$0xff]
        %v372 = vld [vmem:[%s293 + $0x138] sm:$0xff]
        %v373 = vld [vmem:[%s293 + $0x140] sm:$0xff]
        %v374 = vld [vmem:[%s293 + $0x148] sm:$0xff]
        %v375 = vld [vmem:[%s293 + $0x150] sm:$0xff]
        %v376 = vld [vmem:[%s293 + $0x158] sm:$0xff]
        %v377 = vld [vmem:[%s293 + $0x160] sm:$0xff]
        %v378 = vld [vmem:[%s293 + $0x168] sm:$0xff]
        %v379 = vld [vmem:[%s293 + $0x170] sm:$0xff]
        %v380 = vld [vmem:[%s293 + $0x178] sm:$0xff]
        %v381 = vld [vmem:[%s293 + $0x180] sm:$0xff]
        %v382 = vld [vmem:[%s293 + $0x188] sm:$0xff]
        %v383 = vld [vmem:[%s293 + $0x190] sm:$0xff]
        %v384 = vld [vmem:[%s293 + $0x198] sm:$0xff]
        %v385 = vld [vmem:[%s293 + $0x1a0] sm:$0xff]
        %v386 = vld [vmem:[%s293 + $0x1a8] sm:$0xff]
        %v387 = vld [vmem:[%s293 + $0x1b0] sm:$0xff]
        %v388 = vld [vmem:[%s293 + $0x1b8] sm:$0xff]
        %v389 = vld [vmem:[%s293 + $0x1c0] sm:$0xff]
        %v390 = vld [vmem:[%s293 + $0x1c8] sm:$0xff]
        %v391 = vld [vmem:[%s293 + $0x1d0] sm:$0xff]
        %v392 = vld [vmem:[%s293 + $0x1d8] sm:$0xff]
        %v393 = vld [vmem:[%s293 + $0x1e0] sm:$0xff]
        %v394 = vld [vmem:[%s293 + $0x1e8] sm:$0xff]
        %v395 = vld [vmem:[%s293 + $0x1f0] sm:$0xff]
        %v396 = vld [vmem:[%s293 + $0x1f8] sm:$0xff]
        %v397 = vld [vmem:[%s1] sm:$0xff]
        %v398 = vld [vmem:[%s1 + $0x8] sm:$0xff]
        %v399 = vld [vmem:[%s1 + $0x10] sm:$0xff]
        %v400 = vld [vmem:[%s1 + $0x18] sm:$0xff]
        %402 = vset.pattern.permute.xlu0 0
        %403 = vperm.xlu0 %402, %v397
        %v404 = vpop.permute.xlu0 %403
        %407 = vset.pattern.permute.xlu0 0
        %408 = vperm.xlu0 %407, %v398
        %v409 = vpop.permute.xlu0 %408
        %412 = vset.pattern.permute.xlu0 0
        %413 = vperm.xlu0 %412, %v399
        %v414 = vpop.permute.xlu0 %413
        %417 = vset.pattern.permute.xlu0 0
        %418 = vperm.xlu0 %417, %v400
        %v419 = vpop.permute.xlu0 %418
        %v421 = vmul.f32 %v333, %v404
        %v422 = vmul.f32 %v334, %v409
        %v423 = vmul.f32 %v335, %v414
        %v424 = vmul.f32 %v336, %v419
        %v425 = vmul.f32 %v337, %v404
        %v426 = vmul.f32 %v338, %v409
        %v427 = vmul.f32 %v339, %v414
        %v428 = vmul.f32 %v340, %v419
        %v429 = vmul.f32 %v341, %v404
        %v430 = vmul.f32 %v342, %v409
        %v431 = vmul.f32 %v343, %v414
        %v432 = vmul.f32 %v344, %v419
        %v433 = vmul.f32 %v345, %v404
        %v434 = vmul.f32 %v346, %v409
        %v435 = vmul.f32 %v347, %v414
        %v436 = vmul.f32 %v348, %v419
        %v437 = vmul.f32 %v349, %v404
        %v438 = vmul.f32 %v350, %v409
        %v439 = vmul.f32 %v351, %v414
        %v440 = vmul.f32 %v352, %v419
        %v441 = vmul.f32 %v353, %v404
        %v442 = vmul.f32 %v354, %v409
        %v443 = vmul.f32 %v355, %v414
        %v444 = vmul.f32 %v356, %v419
        %v445 = vmul.f32 %v357, %v404
        %v446 = vmul.f32 %v358, %v409
        %v447 = vmul.f32 %v359, %v414
        %v448 = vmul.f32 %v360, %v419
        %v449 = vmul.f32 %v361, %v404
        %v450 = vmul.f32 %v362, %v409
        %v451 = vmul.f32 %v363, %v414
        %v452 = vmul.f32 %v364, %v419
        %v453 = vmul.f32 %v365, %v404
        %v454 = vmul.f32 %v366, %v409
        %v455 = vmul.f32 %v367, %v414
        %v456 = vmul.f32 %v368, %v419
        %v457 = vmul.f32 %v369, %v404
        %v458 = vmul.f32 %v370, %v409
        %v459 = vmul.f32 %v371, %v414
        %v460 = vmul.f32 %v372, %v419
        %v461 = vmul.f32 %v373, %v404
        %v462 = vmul.f32 %v374, %v409
        %v463 = vmul.f32 %v375, %v414
        %v464 = vmul.f32 %v376, %v419
        %v465 = vmul.f32 %v377, %v404
        %v466 = vmul.f32 %v378, %v409
        %v467 = vmul.f32 %v379, %v414
        %v468 = vmul.f32 %v380, %v419
        %v469 = vmul.f32 %v381, %v404
        %v470 = vmul.f32 %v382, %v409
        %v471 = vmul.f32 %v383, %v414
        %v472 = vmul.f32 %v384, %v419
        %v473 = vmul.f32 %v385, %v404
        %v474 = vmul.f32 %v386, %v409
        %v475 = vmul.f32 %v387, %v414
        %v476 = vmul.f32 %v388, %v419
        %v477 = vmul.f32 %v389, %v404
        %v478 = vmul.f32 %v390, %v409
        %v479 = vmul.f32 %v391, %v414
        %v480 = vmul.f32 %v392, %v419
        %v481 = vmul.f32 %v393, %v404
        %v482 = vmul.f32 %v394, %v409
        %v483 = vmul.f32 %v395, %v414
        %v484 = vmul.f32 %v396, %v419
        %vm485 = vcmask 662528
        %v486 = vsel %vm485, %v421, 0.0
        %v487 = vsel %vm485, %v422, 0.0
        %v488 = vadd.f32 %v486, %v487
        %v489 = vsel %vm485, %v423, 0.0
        %v490 = vadd.f32 %v488, %v489
        %v491 = vsel %vm485, %v424, 0.0
        %v492 = vadd.f32 %v490, %v491
        %v493 = vrot.slane %v492, 4
        %v494 = vadd.f32 %v492, %v493
        %v495 = vrot.slane %v494, 2
        %v496 = vadd.f32 %v494, %v495
        %v497 = vrot.slane %v496, 1
        %v498 = vadd.f32 %v496, %v497
        %v499 = vsel %vm485, %v425, 0.0
        %v500 = vsel %vm485, %v426, 0.0
        %v501 = vadd.f32 %v499, %v500
        %v502 = vsel %vm485, %v427, 0.0
        %v503 = vadd.f32 %v501, %v502
        %v504 = vsel %vm485, %v428, 0.0
        %v505 = vadd.f32 %v503, %v504
        %v506 = vrot.slane %v505, 4
        %v507 = vadd.f32 %v505, %v506
        %v508 = vrot.slane %v507, 2
        %v509 = vadd.f32 %v507, %v508
        %v510 = vrot.slane %v509, 1
        %v511 = vadd.f32 %v509, %v510
        %v512 = vsel %vm485, %v429, 0.0
        %v513 = vsel %vm485, %v430, 0.0
        %v514 = vadd.f32 %v512, %v513
        %v515 = vsel %vm485, %v431, 0.0
        %v516 = vadd.f32 %v514, %v515
        %v517 = vsel %vm485, %v432, 0.0
        %v518 = vadd.f32 %v516, %v517
        %v519 = vrot.slane %v518, 4
        %v520 = vadd.f32 %v518, %v519
        %v521 = vrot.slane %v520, 2
        %v522 = vadd.f32 %v520, %v521
        %v523 = vrot.slane %v522, 1
        %v524 = vadd.f32 %v522, %v523
        %v525 = vsel %vm485, %v433, 0.0
        %v526 = vsel %vm485, %v434, 0.0
        %v527 = vadd.f32 %v525, %v526
        %v528 = vsel %vm485, %v435, 0.0
        %v529 = vadd.f32 %v527, %v528
        %v530 = vsel %vm485, %v436, 0.0
        %v531 = vadd.f32 %v529, %v530
        %v532 = vrot.slane %v531, 4
        %v533 = vadd.f32 %v531, %v532
        %v534 = vrot.slane %v533, 2
        %v535 = vadd.f32 %v533, %v534
        %v536 = vrot.slane %v535, 1
        %v537 = vadd.f32 %v535, %v536
        %v538 = vsel %vm485, %v437, 0.0
        %v539 = vsel %vm485, %v438, 0.0
        %v540 = vadd.f32 %v538, %v539
        %v541 = vsel %vm485, %v439, 0.0
        %v542 = vadd.f32 %v540, %v541
        %v543 = vsel %vm485, %v440, 0.0
        %v544 = vadd.f32 %v542, %v543
        %v545 = vrot.slane %v544, 4
        %v546 = vadd.f32 %v544, %v545
        %v547 = vrot.slane %v546, 2
        %v548 = vadd.f32 %v546, %v547
        %v549 = vrot.slane %v548, 1
        %v550 = vadd.f32 %v548, %v549
        %v551 = vsel %vm485, %v441, 0.0
        %v552 = vsel %vm485, %v442, 0.0
        %v553 = vadd.f32 %v551, %v552
        %v554 = vsel %vm485, %v443, 0.0
        %v555 = vadd.f32 %v553, %v554
        %v556 = vsel %vm485, %v444, 0.0
        %v557 = vadd.f32 %v555, %v556
        %v558 = vrot.slane %v557, 4
        %v559 = vadd.f32 %v557, %v558
        %v560 = vrot.slane %v559, 2
        %v561 = vadd.f32 %v559, %v560
        %v562 = vrot.slane %v561, 1
        %v563 = vadd.f32 %v561, %v562
        %v564 = vsel %vm485, %v445, 0.0
        %v565 = vsel %vm485, %v446, 0.0
        %v566 = vadd.f32 %v564, %v565
        %v567 = vsel %vm485, %v447, 0.0
        %v568 = vadd.f32 %v566, %v567
        %v569 = vsel %vm485, %v448, 0.0
        %v570 = vadd.f32 %v568, %v569
        %v571 = vrot.slane %v570, 4
        %v572 = vadd.f32 %v570, %v571
        %v573 = vrot.slane %v572, 2
        %v574 = vadd.f32 %v572, %v573
        %v575 = vrot.slane %v574, 1
        %v576 = vadd.f32 %v574, %v575
        %v577 = vsel %vm485, %v449, 0.0
        %v578 = vsel %vm485, %v450, 0.0
        %v579 = vadd.f32 %v577, %v578
        %v580 = vsel %vm485, %v451, 0.0
        %v581 = vadd.f32 %v579, %v580
        %v582 = vsel %vm485, %v452, 0.0
        %v583 = vadd.f32 %v581, %v582
        %v584 = vrot.slane %v583, 4
        %v585 = vadd.f32 %v583, %v584
        %v586 = vrot.slane %v585, 2
        %v587 = vadd.f32 %v585, %v586
        %v588 = vrot.slane %v587, 1
        %v589 = vadd.f32 %v587, %v588
        %v590 = vsel %vm485, %v453, 0.0
        %v591 = vsel %vm485, %v454, 0.0
        %v592 = vadd.f32 %v590, %v591
        %v593 = vsel %vm485, %v455, 0.0
        %v594 = vadd.f32 %v592, %v593
        %v595 = vsel %vm485, %v456, 0.0
        %v596 = vadd.f32 %v594, %v595
        %v597 = vrot.slane %v596, 4
        %v598 = vadd.f32 %v596, %v597
        %v599 = vrot.slane %v598, 2
        %v600 = vadd.f32 %v598, %v599
        %v601 = vrot.slane %v600, 1
        %v602 = vadd.f32 %v600, %v601
        %v603 = vsel %vm485, %v457, 0.0
        %v604 = vsel %vm485, %v458, 0.0
        %v605 = vadd.f32 %v603, %v604
        %v606 = vsel %vm485, %v459, 0.0
        %v607 = vadd.f32 %v605, %v606
        %v608 = vsel %vm485, %v460, 0.0
        %v609 = vadd.f32 %v607, %v608
        %v610 = vrot.slane %v609, 4
        %v611 = vadd.f32 %v609, %v610
        %v612 = vrot.slane %v611, 2
        %v613 = vadd.f32 %v611, %v612
        %v614 = vrot.slane %v613, 1
        %v615 = vadd.f32 %v613, %v614
        %v616 = vsel %vm485, %v461, 0.0
        %v617 = vsel %vm485, %v462, 0.0
        %v618 = vadd.f32 %v616, %v617
        %v619 = vsel %vm485, %v463, 0.0
        %v620 = vadd.f32 %v618, %v619
        %v621 = vsel %vm485, %v464, 0.0
        %v622 = vadd.f32 %v620, %v621
        %v623 = vrot.slane %v622, 4
        %v624 = vadd.f32 %v622, %v623
        %v625 = vrot.slane %v624, 2
        %v626 = vadd.f32 %v624, %v625
        %v627 = vrot.slane %v626, 1
        %v628 = vadd.f32 %v626, %v627
        %v629 = vsel %vm485, %v465, 0.0
        %v630 = vsel %vm485, %v466, 0.0
        %v631 = vadd.f32 %v629, %v630
        %v632 = vsel %vm485, %v467, 0.0
        %v633 = vadd.f32 %v631, %v632
        %v634 = vsel %vm485, %v468, 0.0
        %v635 = vadd.f32 %v633, %v634
        %v636 = vrot.slane %v635, 4
        %v637 = vadd.f32 %v635, %v636
        %v638 = vrot.slane %v637, 2
        %v639 = vadd.f32 %v637, %v638
        %v640 = vrot.slane %v639, 1
        %v641 = vadd.f32 %v639, %v640
        %v642 = vsel %vm485, %v469, 0.0
        %v643 = vsel %vm485, %v470, 0.0
        %v644 = vadd.f32 %v642, %v643
        %v645 = vsel %vm485, %v471, 0.0
        %v646 = vadd.f32 %v644, %v645
        %v647 = vsel %vm485, %v472, 0.0
        %v648 = vadd.f32 %v646, %v647
        %v649 = vrot.slane %v648, 4
        %v650 = vadd.f32 %v648, %v649
        %v651 = vrot.slane %v650, 2
        %v652 = vadd.f32 %v650, %v651
        %v653 = vrot.slane %v652, 1
        %v654 = vadd.f32 %v652, %v653
        %v655 = vsel %vm485, %v473, 0.0
        %v656 = vsel %vm485, %v474, 0.0
        %v657 = vadd.f32 %v655, %v656
        %v658 = vsel %vm485, %v475, 0.0
        %v659 = vadd.f32 %v657, %v658
        %v660 = vsel %vm485, %v476, 0.0
        %v661 = vadd.f32 %v659, %v660
        %v662 = vrot.slane %v661, 4
        %v663 = vadd.f32 %v661, %v662
        %v664 = vrot.slane %v663, 2
        %v665 = vadd.f32 %v663, %v664
        %v666 = vrot.slane %v665, 1
        %v667 = vadd.f32 %v665, %v666
        %v668 = vsel %vm485, %v477, 0.0
        %v669 = vsel %vm485, %v478, 0.0
        %v670 = vadd.f32 %v668, %v669
        %v671 = vsel %vm485, %v479, 0.0
        %v672 = vadd.f32 %v670, %v671
        %v673 = vsel %vm485, %v480, 0.0
        %v674 = vadd.f32 %v672, %v673
        %v675 = vrot.slane %v674, 4
        %v676 = vadd.f32 %v674, %v675
        %v677 = vrot.slane %v676, 2
        %v678 = vadd.f32 %v676, %v677
        %v679 = vrot.slane %v678, 1
        %v680 = vadd.f32 %v678, %v679
        %v681 = vsel %vm485, %v481, 0.0
        %v682 = vsel %vm485, %v482, 0.0
        %v683 = vadd.f32 %v681, %v682
        %v684 = vsel %vm485, %v483, 0.0
        %v685 = vadd.f32 %v683, %v684
        %v686 = vsel %vm485, %v484, 0.0
        %v687 = vadd.f32 %v685, %v686
        %v688 = vrot.slane %v687, 4
        %v689 = vadd.f32 %v687, %v688
        %v690 = vrot.slane %v689, 2
        %v691 = vadd.f32 %v689, %v690
        %v692 = vrot.slane %v691, 1
        %v693 = vadd.f32 %v691, %v692
        %v694 = vld [vmem:[%s2] sm:$0xff]
        %v695 = vld [vmem:[%s2 + $0x8] sm:$0xff]
        %v696 = vld [vmem:[%s2 + $0x10] sm:$0xff]
        %v697 = vld [vmem:[%s2 + $0x18] sm:$0xff]
        %699 = vset.pattern.permute.xlu0 0
        %700 = vperm.xlu0 %699, %v694
        %v701 = vpop.permute.xlu0 %700
        %704 = vset.pattern.permute.xlu0 0
        %705 = vperm.xlu0 %704, %v695
        %v706 = vpop.permute.xlu0 %705
        %709 = vset.pattern.permute.xlu0 0
        %710 = vperm.xlu0 %709, %v696
        %v711 = vpop.permute.xlu0 %710
        %714 = vset.pattern.permute.xlu0 0
        %715 = vperm.xlu0 %714, %v697
        %v716 = vpop.permute.xlu0 %715
        %v718 = vmul.f32 %v333, %v701
        %v719 = vmul.f32 %v334, %v706
        %v720 = vmul.f32 %v335, %v711
        %v721 = vmul.f32 %v336, %v716
        %v722 = vmul.f32 %v337, %v701
        %v723 = vmul.f32 %v338, %v706
        %v724 = vmul.f32 %v339, %v711
        %v725 = vmul.f32 %v340, %v716
        %v726 = vmul.f32 %v341, %v701
        %v727 = vmul.f32 %v342, %v706
        %v728 = vmul.f32 %v343, %v711
        %v729 = vmul.f32 %v344, %v716
        %v730 = vmul.f32 %v345, %v701
        %v731 = vmul.f32 %v346, %v706
        %v732 = vmul.f32 %v347, %v711
        %v733 = vmul.f32 %v348, %v716
        %v734 = vmul.f32 %v349, %v701
        %v735 = vmul.f32 %v350, %v706
        %v736 = vmul.f32 %v351, %v711
        %v737 = vmul.f32 %v352, %v716
        %v738 = vmul.f32 %v353, %v701
        %v739 = vmul.f32 %v354, %v706
        %v740 = vmul.f32 %v355, %v711
        %v741 = vmul.f32 %v356, %v716
        %v742 = vmul.f32 %v357, %v701
        %v743 = vmul.f32 %v358, %v706
        %v744 = vmul.f32 %v359, %v711
        %v745 = vmul.f32 %v360, %v716
        %v746 = vmul.f32 %v361, %v701
        %v747 = vmul.f32 %v362, %v706
        %v748 = vmul.f32 %v363, %v711
        %v749 = vmul.f32 %v364, %v716
        %v750 = vmul.f32 %v365, %v701
        %v751 = vmul.f32 %v366, %v706
        %v752 = vmul.f32 %v367, %v711
        %v753 = vmul.f32 %v368, %v716
        %v754 = vmul.f32 %v369, %v701
        %v755 = vmul.f32 %v370, %v706
        %v756 = vmul.f32 %v371, %v711
        %v757 = vmul.f32 %v372, %v716
        %v758 = vmul.f32 %v373, %v701
        %v759 = vmul.f32 %v374, %v706
        %v760 = vmul.f32 %v375, %v711
        %v761 = vmul.f32 %v376, %v716
        %v762 = vmul.f32 %v377, %v701
        %v763 = vmul.f32 %v378, %v706
        %v764 = vmul.f32 %v379, %v711
        %v765 = vmul.f32 %v380, %v716
        %v766 = vmul.f32 %v381, %v701
        %v767 = vmul.f32 %v382, %v706
        %v768 = vmul.f32 %v383, %v711
        %v769 = vmul.f32 %v384, %v716
        %v770 = vmul.f32 %v385, %v701
        %v771 = vmul.f32 %v386, %v706
        %v772 = vmul.f32 %v387, %v711
        %v773 = vmul.f32 %v388, %v716
        %v774 = vmul.f32 %v389, %v701
        %v775 = vmul.f32 %v390, %v706
        %v776 = vmul.f32 %v391, %v711
        %v777 = vmul.f32 %v392, %v716
        %v778 = vmul.f32 %v393, %v701
        %v779 = vmul.f32 %v394, %v706
        %v780 = vmul.f32 %v395, %v711
        %v781 = vmul.f32 %v396, %v716
        %v782 = vsel %vm485, %v718, 0.0
        %v783 = vsel %vm485, %v719, 0.0
        %v784 = vadd.f32 %v782, %v783
        %v785 = vsel %vm485, %v720, 0.0
        %v786 = vadd.f32 %v784, %v785
        %v787 = vsel %vm485, %v721, 0.0
        %v788 = vadd.f32 %v786, %v787
        %v789 = vrot.slane %v788, 4
        %v790 = vadd.f32 %v788, %v789
        %v791 = vrot.slane %v790, 2
        %v792 = vadd.f32 %v790, %v791
        %v793 = vrot.slane %v792, 1
        %v794 = vadd.f32 %v792, %v793
        %v795 = vsel %vm485, %v722, 0.0
        %v796 = vsel %vm485, %v723, 0.0
        %v797 = vadd.f32 %v795, %v796
        %v798 = vsel %vm485, %v724, 0.0
        %v799 = vadd.f32 %v797, %v798
        %v800 = vsel %vm485, %v725, 0.0
        %v801 = vadd.f32 %v799, %v800
        %v802 = vrot.slane %v801, 4
        %v803 = vadd.f32 %v801, %v802
        %v804 = vrot.slane %v803, 2
        %v805 = vadd.f32 %v803, %v804
        %v806 = vrot.slane %v805, 1
        %v807 = vadd.f32 %v805, %v806
        %v808 = vsel %vm485, %v726, 0.0
        %v809 = vsel %vm485, %v727, 0.0
        %v810 = vadd.f32 %v808, %v809
        %v811 = vsel %vm485, %v728, 0.0
        %v812 = vadd.f32 %v810, %v811
        %v813 = vsel %vm485, %v729, 0.0
        %v814 = vadd.f32 %v812, %v813
        %v815 = vrot.slane %v814, 4
        %v816 = vadd.f32 %v814, %v815
        %v817 = vrot.slane %v816, 2
        %v818 = vadd.f32 %v816, %v817
        %v819 = vrot.slane %v818, 1
        %v820 = vadd.f32 %v818, %v819
        %v821 = vsel %vm485, %v730, 0.0
        %v822 = vsel %vm485, %v731, 0.0
        %v823 = vadd.f32 %v821, %v822
        %v824 = vsel %vm485, %v732, 0.0
        %v825 = vadd.f32 %v823, %v824
        %v826 = vsel %vm485, %v733, 0.0
        %v827 = vadd.f32 %v825, %v826
        %v828 = vrot.slane %v827, 4
        %v829 = vadd.f32 %v827, %v828
        %v830 = vrot.slane %v829, 2
        %v831 = vadd.f32 %v829, %v830
        %v832 = vrot.slane %v831, 1
        %v833 = vadd.f32 %v831, %v832
        %v834 = vsel %vm485, %v734, 0.0
        %v835 = vsel %vm485, %v735, 0.0
        %v836 = vadd.f32 %v834, %v835
        %v837 = vsel %vm485, %v736, 0.0
        %v838 = vadd.f32 %v836, %v837
        %v839 = vsel %vm485, %v737, 0.0
        %v840 = vadd.f32 %v838, %v839
        %v841 = vrot.slane %v840, 4
        %v842 = vadd.f32 %v840, %v841
        %v843 = vrot.slane %v842, 2
        %v844 = vadd.f32 %v842, %v843
        %v845 = vrot.slane %v844, 1
        %v846 = vadd.f32 %v844, %v845
        %v847 = vsel %vm485, %v738, 0.0
        %v848 = vsel %vm485, %v739, 0.0
        %v849 = vadd.f32 %v847, %v848
        %v850 = vsel %vm485, %v740, 0.0
        %v851 = vadd.f32 %v849, %v850
        %v852 = vsel %vm485, %v741, 0.0
        %v853 = vadd.f32 %v851, %v852
        %v854 = vrot.slane %v853, 4
        %v855 = vadd.f32 %v853, %v854
        %v856 = vrot.slane %v855, 2
        %v857 = vadd.f32 %v855, %v856
        %v858 = vrot.slane %v857, 1
        %v859 = vadd.f32 %v857, %v858
        %v860 = vsel %vm485, %v742, 0.0
        %v861 = vsel %vm485, %v743, 0.0
        %v862 = vadd.f32 %v860, %v861
        %v863 = vsel %vm485, %v744, 0.0
        %v864 = vadd.f32 %v862, %v863
        %v865 = vsel %vm485, %v745, 0.0
        %v866 = vadd.f32 %v864, %v865
        %v867 = vrot.slane %v866, 4
        %v868 = vadd.f32 %v866, %v867
        %v869 = vrot.slane %v868, 2
        %v870 = vadd.f32 %v868, %v869
        %v871 = vrot.slane %v870, 1
        %v872 = vadd.f32 %v870, %v871
        %v873 = vsel %vm485, %v746, 0.0
        %v874 = vsel %vm485, %v747, 0.0
        %v875 = vadd.f32 %v873, %v874
        %v876 = vsel %vm485, %v748, 0.0
        %v877 = vadd.f32 %v875, %v876
        %v878 = vsel %vm485, %v749, 0.0
        %v879 = vadd.f32 %v877, %v878
        %v880 = vrot.slane %v879, 4
        %v881 = vadd.f32 %v879, %v880
        %v882 = vrot.slane %v881, 2
        %v883 = vadd.f32 %v881, %v882
        %v884 = vrot.slane %v883, 1
        %v885 = vadd.f32 %v883, %v884
        %v886 = vsel %vm485, %v750, 0.0
        %v887 = vsel %vm485, %v751, 0.0
        %v888 = vadd.f32 %v886, %v887
        %v889 = vsel %vm485, %v752, 0.0
        %v890 = vadd.f32 %v888, %v889
        %v891 = vsel %vm485, %v753, 0.0
        %v892 = vadd.f32 %v890, %v891
        %v893 = vrot.slane %v892, 4
        %v894 = vadd.f32 %v892, %v893
        %v895 = vrot.slane %v894, 2
        %v896 = vadd.f32 %v894, %v895
        %v897 = vrot.slane %v896, 1
        %v898 = vadd.f32 %v896, %v897
        %v899 = vsel %vm485, %v754, 0.0
        %v900 = vsel %vm485, %v755, 0.0
        %v901 = vadd.f32 %v899, %v900
        %v902 = vsel %vm485, %v756, 0.0
        %v903 = vadd.f32 %v901, %v902
        %v904 = vsel %vm485, %v757, 0.0
        %v905 = vadd.f32 %v903, %v904
        %v906 = vrot.slane %v905, 4
        %v907 = vadd.f32 %v905, %v906
        %v908 = vrot.slane %v907, 2
        %v909 = vadd.f32 %v907, %v908
        %v910 = vrot.slane %v909, 1
        %v911 = vadd.f32 %v909, %v910
        %v912 = vsel %vm485, %v758, 0.0
        %v913 = vsel %vm485, %v759, 0.0
        %v914 = vadd.f32 %v912, %v913
        %v915 = vsel %vm485, %v760, 0.0
        %v916 = vadd.f32 %v914, %v915
        %v917 = vsel %vm485, %v761, 0.0
        %v918 = vadd.f32 %v916, %v917
        %v919 = vrot.slane %v918, 4
        %v920 = vadd.f32 %v918, %v919
        %v921 = vrot.slane %v920, 2
        %v922 = vadd.f32 %v920, %v921
        %v923 = vrot.slane %v922, 1
        %v924 = vadd.f32 %v922, %v923
        %v925 = vsel %vm485, %v762, 0.0
        %v926 = vsel %vm485, %v763, 0.0
        %v927 = vadd.f32 %v925, %v926
        %v928 = vsel %vm485, %v764, 0.0
        %v929 = vadd.f32 %v927, %v928
        %v930 = vsel %vm485, %v765, 0.0
        %v931 = vadd.f32 %v929, %v930
        %v932 = vrot.slane %v931, 4
        %v933 = vadd.f32 %v931, %v932
        %v934 = vrot.slane %v933, 2
        %v935 = vadd.f32 %v933, %v934
        %v936 = vrot.slane %v935, 1
        %v937 = vadd.f32 %v935, %v936
        %v938 = vsel %vm485, %v766, 0.0
        %v939 = vsel %vm485, %v767, 0.0
        %v940 = vadd.f32 %v938, %v939
        %v941 = vsel %vm485, %v768, 0.0
        %v942 = vadd.f32 %v940, %v941
        %v943 = vsel %vm485, %v769, 0.0
        %v944 = vadd.f32 %v942, %v943
        %v945 = vrot.slane %v944, 4
        %v946 = vadd.f32 %v944, %v945
        %v947 = vrot.slane %v946, 2
        %v948 = vadd.f32 %v946, %v947
        %v949 = vrot.slane %v948, 1
        %v950 = vadd.f32 %v948, %v949
        %v951 = vsel %vm485, %v770, 0.0
        %v952 = vsel %vm485, %v771, 0.0
        %v953 = vadd.f32 %v951, %v952
        %v954 = vsel %vm485, %v772, 0.0
        %v955 = vadd.f32 %v953, %v954
        %v956 = vsel %vm485, %v773, 0.0
        %v957 = vadd.f32 %v955, %v956
        %v958 = vrot.slane %v957, 4
        %v959 = vadd.f32 %v957, %v958
        %v960 = vrot.slane %v959, 2
        %v961 = vadd.f32 %v959, %v960
        %v962 = vrot.slane %v961, 1
        %v963 = vadd.f32 %v961, %v962
        %v964 = vsel %vm485, %v774, 0.0
        %v965 = vsel %vm485, %v775, 0.0
        %v966 = vadd.f32 %v964, %v965
        %v967 = vsel %vm485, %v776, 0.0
        %v968 = vadd.f32 %v966, %v967
        %v969 = vsel %vm485, %v777, 0.0
        %v970 = vadd.f32 %v968, %v969
        %v971 = vrot.slane %v970, 4
        %v972 = vadd.f32 %v970, %v971
        %v973 = vrot.slane %v972, 2
        %v974 = vadd.f32 %v972, %v973
        %v975 = vrot.slane %v974, 1
        %v976 = vadd.f32 %v974, %v975
        %v977 = vsel %vm485, %v778, 0.0
        %v978 = vsel %vm485, %v779, 0.0
        %v979 = vadd.f32 %v977, %v978
        %v980 = vsel %vm485, %v780, 0.0
        %v981 = vadd.f32 %v979, %v980
        %v982 = vsel %vm485, %v781, 0.0
        %v983 = vadd.f32 %v981, %v982
        %v984 = vrot.slane %v983, 4
        %v985 = vadd.f32 %v983, %v984
        %v986 = vrot.slane %v985, 2
        %v987 = vadd.f32 %v985, %v986
        %v988 = vrot.slane %v987, 1
        %v989 = vadd.f32 %v987, %v988
        %v990 = vld [vmem:[#allocation2] sm:$0x1]
        %v992 = vlaneseq
        %v993 = vshrl.u32 %v992, 7
        %v994 = vsub.s32 0, %v993
        %v995 = vrot.slane %v990, %v994
        %996 = vset.pattern.permute.xlu0 0
        %997 = vperm.xlu0 %996, %v995
        %v998 = vpop.permute.xlu0 %997
        %v1000 = vadd.f32 %v498, %v998
        %v1001 = vadd.f32 %v511, %v998
        %v1002 = vadd.f32 %v524, %v998
        %v1003 = vadd.f32 %v537, %v998
        %v1004 = vadd.f32 %v550, %v998
        %v1005 = vadd.f32 %v563, %v998
        %v1006 = vadd.f32 %v576, %v998
        %v1007 = vadd.f32 %v589, %v998
        %v1008 = vadd.f32 %v602, %v998
        %v1009 = vadd.f32 %v615, %v998
        %v1010 = vadd.f32 %v628, %v998
        %v1011 = vadd.f32 %v641, %v998
        %v1012 = vadd.f32 %v654, %v998
        %v1013 = vadd.f32 %v667, %v998
        %v1014 = vadd.f32 %v680, %v998
        %v1015 = vadd.f32 %v693, %v998
        %v1016 = vmax.f32 %v1000, 0.0
        %v1017 = vmax.f32 %v1001, 0.0
        %v1018 = vmax.f32 %v1002, 0.0
        %v1019 = vmax.f32 %v1003, 0.0
        %v1020 = vmax.f32 %v1004, 0.0
        %v1021 = vmax.f32 %v1005, 0.0
        %v1022 = vmax.f32 %v1006, 0.0
        %v1023 = vmax.f32 %v1007, 0.0
        %v1024 = vmax.f32 %v1008, 0.0
        %v1025 = vmax.f32 %v1009, 0.0
        %v1026 = vmax.f32 %v1010, 0.0
        %v1027 = vmax.f32 %v1011, 0.0
        %v1028 = vmax.f32 %v1012, 0.0
        %v1029 = vmax.f32 %v1013, 0.0
        %v1030 = vmax.f32 %v1014, 0.0
        %v1031 = vmax.f32 %v1015, 0.0
        %v1032 = vld [vmem:[#allocation3] sm:$0x1]
        %v1034 = vlaneseq
        %v1035 = vshrl.u32 %v1034, 7
        %v1036 = vsub.s32 0, %v1035
        %v1037 = vrot.slane %v1032, %v1036
        %1038 = vset.pattern.permute.xlu0 0
        %1039 = vperm.xlu0 %1038, %v1037
        %v1040 = vpop.permute.xlu0 %1039
        %v1042 = vadd.f32 %v794, %v1040
        %v1043 = vadd.f32 %v807, %v1040
        %v1044 = vadd.f32 %v820, %v1040
        %v1045 = vadd.f32 %v833, %v1040
        %v1046 = vadd.f32 %v846, %v1040
        %v1047 = vadd.f32 %v859, %v1040
        %v1048 = vadd.f32 %v872, %v1040
        %v1049 = vadd.f32 %v885, %v1040
        %v1050 = vadd.f32 %v898, %v1040
        %v1051 = vadd.f32 %v911, %v1040
        %v1052 = vadd.f32 %v924, %v1040
        %v1053 = vadd.f32 %v937, %v1040
        %v1054 = vadd.f32 %v950, %v1040
        %v1055 = vadd.f32 %v963, %v1040
        %v1056 = vadd.f32 %v976, %v1040
        %v1057 = vadd.f32 %v989, %v1040
        %v1058 = vmax.f32 %v1042, 0.0
        %v1059 = vmax.f32 %v1043, 0.0
        %v1060 = vmax.f32 %v1044, 0.0
        %v1061 = vmax.f32 %v1045, 0.0
        %v1062 = vmax.f32 %v1046, 0.0
        %v1063 = vmax.f32 %v1047, 0.0
        %v1064 = vmax.f32 %v1048, 0.0
        %v1065 = vmax.f32 %v1049, 0.0
        %v1066 = vmax.f32 %v1050, 0.0
        %v1067 = vmax.f32 %v1051, 0.0
        %v1068 = vmax.f32 %v1052, 0.0
        %v1069 = vmax.f32 %v1053, 0.0
        %v1070 = vmax.f32 %v1054, 0.0
        %v1071 = vmax.f32 %v1055, 0.0
        %v1072 = vmax.f32 %v1056, 0.0
        %v1073 = vmax.f32 %v1057, 0.0
        %v1074 = vld [vmem:[%s5] sm:$0xff]
        %v1075 = vld [vmem:[%s5 + $0x8] sm:$0xff]
        %v1076 = vld [vmem:[%s5 + $0x10] sm:$0xff]
        %v1077 = vld [vmem:[%s5 + $0x18] sm:$0xff]
        %v1078 = vld [vmem:[%s5 + $0x20] sm:$0xff]
        %v1079 = vld [vmem:[%s5 + $0x28] sm:$0xff]
        %v1080 = vld [vmem:[%s5 + $0x30] sm:$0xff]
        %v1081 = vld [vmem:[%s5 + $0x38] sm:$0xff]
        %v1082 = vld [vmem:[%s5 + $0x40] sm:$0xff]
        %v1083 = vld [vmem:[%s5 + $0x48] sm:$0xff]
        %v1084 = vld [vmem:[%s5 + $0x50] sm:$0x1]
        %v1085 = vld [vmem:[%s6] sm:$0xff]
        %v1086 = vld [vmem:[%s6 + $0x8] sm:$0xff]
        %v1087 = vld [vmem:[%s6 + $0x10] sm:$0xff]
        %v1088 = vld [vmem:[%s6 + $0x18] sm:$0xff]
        %v1089 = vld [vmem:[%s6 + $0x20] sm:$0xff]
        %v1090 = vld [vmem:[%s6 + $0x28] sm:$0xff]
        %v1091 = vld [vmem:[%s6 + $0x30] sm:$0xff]
        %v1092 = vld [vmem:[%s6 + $0x38] sm:$0xff]
        %v1093 = vld [vmem:[%s6 + $0x40] sm:$0xff]
        %v1094 = vld [vmem:[%s6 + $0x48] sm:$0xff]
        %v1095 = vld [vmem:[%s6 + $0x50] sm:$0x1]
        %vm1112 = vcmask 1041409
        %v1113 = vsel %vm1112, %v1059, %v1058
        %vm1114 = vcmask 1042434
        %v1115 = vsel %vm1114, %v1060, %v1113
        %vm1116 = vcmask 1043459
        %v1117 = vsel %vm1116, %v1061, %v1115
        %vm1118 = vcmask 1044484
        %v1119 = vsel %vm1118, %v1062, %v1117
        %vm1120 = vcmask 1045509
        %v1121 = vsel %vm1120, %v1063, %v1119
        %vm1122 = vcmask 1046534
        %v1123 = vsel %vm1122, %v1064, %v1121
        %vm1124 = vcmask 1047559
        %v1125 = vsel %vm1124, %v1065, %v1123
        %v1126 = vsel %vm1112, %v1067, %v1066
        %v1127 = vsel %vm1114, %v1068, %v1126
        %v1128 = vsel %vm1116, %v1069, %v1127
        %v1129 = vsel %vm1118, %v1070, %v1128
        %v1130 = vsel %vm1120, %v1071, %v1129
        %v1131 = vsel %vm1122, %v1072, %v1130
        %v1132 = vsel %vm1124, %v1073, %v1131
        %v1133 = vsel %vm485, %v1125, 0
        %v1135 = vsel %vm485, %v1132, 0
        %vm1137 = vcmask 1040384
        %v1139 = vsel %vm1137, %v1095, 0
        %1141 = vmatprep.subr.mxu0 0.0
        %1142 = vmatpush1.msra.mxu0 %v1085
        %1143 = vmatprep.subr.mxu0 0.0
        %1144 = vmatpush1.msra.mxu0 %v1086
        %1145 = vmatprep.subr.mxu0 0.0
        %1146 = vmatpush1.msra.mxu0 %v1087
        %1147 = vmatprep.subr.mxu0 0.0
        %1148 = vmatpush1.msra.mxu0 %v1088
        %1149 = vmatprep.subr.mxu0 0.0
        %1150 = vmatpush1.msra.mxu0 %v1089
        %1151 = vmatprep.subr.mxu0 0.0
        %1152 = vmatpush1.msra.mxu0 %v1090
        %1153 = vmatprep.subr.mxu0 0.0
        %1154 = vmatpush1.msra.mxu0 %v1091
        %1155 = vmatprep.subr.mxu0 0.0
        %1156 = vmatpush1.msra.mxu0 %v1092
        %1157 = vmatprep.subr.mxu0 0.0
        %1158 = vmatpush1.msra.mxu0 %v1093
        %1159 = vmatprep.subr.mxu0 0.0
        %1160 = vmatpush1.msra.mxu0 %v1094
        %1161 = vmatprep.subr.mxu0 0.0
        %1162 = vmatpush1.msra.mxu0 %v1139
        %1163 = vmatprep.subr.mxu0 0.0
        %1164 = vmatpush1.msra.mxu0 0.0
        %1165 = vmatprep.subr.mxu0 0.0
        %1166 = vmatpush1.msra.mxu0 0.0
        %1167 = vmatprep.subr.mxu0 0.0
        %1168 = vmatpush1.msra.mxu0 0.0
        %1169 = vmatprep.subr.mxu0 0.0
        %1170 = vmatpush1.msra.mxu0 0.0
        %1171 = vmatprep.subr.mxu0 0.0
        %1172 = vmatpush1.msra.mxu0 0.0
        %1173 = vmatprep.subr.mxu0 0.0
        %1174 = vmatpush1.msra.mxu0 0.0
        %1175 = vmatprep.subr.mxu0 0.0
        %1176 = vmatpush1.msra.mxu0 0.0
        %1177 = vmatprep.subr.mxu0 0.0
        %1178 = vmatpush1.msra.mxu0 0.0
        %1179 = vmatprep.subr.mxu0 0.0
        %1180 = vmatpush1.msra.mxu0 0.0
        %1181 = vmatprep.subr.mxu0 0.0
        %1182 = vmatpush1.msra.mxu0 0.0
        %1183 = vmatprep.subr.mxu0 0.0
        %1184 = vmatpush1.msra.mxu0 0.0
        %1185 = vmatprep.subr.mxu0 0.0
        %1186 = vmatpush1.msra.mxu0 0.0
        %1187 = vmatprep.subr.mxu0 0.0
        %1188 = vmatpush1.msra.mxu0 0.0
        %1189 = vmatprep.subr.mxu0 0.0
        %1190 = vmatpush1.msra.mxu0 0.0
        %1191 = vmatprep.subr.mxu0 0.0
        %1192 = vmatpush1.msra.mxu0 0.0
        %1193 = vmatprep.subr.mxu0 0.0
        %1194 = vmatpush1.msra.mxu0 0.0
        %1195 = vmatprep.subr.mxu0 0.0
        %1196 = vmatpush1.msra.mxu0 0.0
        %1197 = vmatprep.subr.mxu0 0.0
        %1198 = vmatpush1.msra.mxu0 0.0
        %1199 = vmatprep.subr.mxu0 0.0
        %1200 = vmatpush1.msra.mxu0 0.0
        %1201 = vmatprep.subr.mxu0 0.0
        %1202 = vmatpush1.msra.mxu0 0.0
        %1203 = vmatprep.subr.mxu0 0.0
        %1204 = vmatpush1.msra.mxu0 0.0
        %1205 = vmatprep.mubr.f32.mxu0 0.0
        %1206 = vmatmul.mubr.f32.gmra.mrb[0].mxu0 %v1133
        %v1207 = vpop.f32.mrb[0].mxu0
        %v1208 = vadd.f32 0.0, %v1207
        %v1209 = vpop.f32.mrb[0].mxu0
        %1210 = vmatprep.mubr.f32.mxu0 0.0
        %1211 = vmatmul.mubr.f32.gmra.mrb[0].mxu0 %v1135
        %v1212 = vpop.f32.mrb[0].mxu0
        %v1213 = vadd.f32 0.0, %v1212
        %v1214 = vpop.f32.mrb[0].mxu0
        %1215 = vdwg.mxu0
        %v1232 = vsel %vm1112, %v1017, %v1016
        %v1233 = vsel %vm1114, %v1018, %v1232
        %v1234 = vsel %vm1116, %v1019, %v1233
        %v1235 = vsel %vm1118, %v1020, %v1234
        %v1236 = vsel %vm1120, %v1021, %v1235
        %v1237 = vsel %vm1122, %v1022, %v1236
        %v1238 = vsel %vm1124, %v1023, %v1237
        %v1239 = vsel %vm1112, %v1025, %v1024
        %v1240 = vsel %vm1114, %v1026, %v1239
        %v1241 = vsel %vm1116, %v1027, %v1240
        %v1242 = vsel %vm1118, %v1028, %v1241
        %v1243 = vsel %vm1120, %v1029, %v1242
        %v1244 = vsel %vm1122, %v1030, %v1243
        %v1245 = vsel %vm1124, %v1031, %v1244
        %v1246 = vsel %vm485, %v1238, 0
        %v1248 = vsel %vm485, %v1245, 0
        %v1251 = vsel %vm1137, %v1084, 0
        %1253 = vmatprep.subr.mxu0 0.0
        %1254 = vmatpush1.msra.mxu0 %v1074
        %1255 = vmatprep.subr.mxu0 0.0
        %1256 = vmatpush1.msra.mxu0 %v1075
        %1257 = vmatprep.subr.mxu0 0.0
        %1258 = vmatpush1.msra.mxu0 %v1076
        %1259 = vmatprep.subr.mxu0 0.0
        %1260 = vmatpush1.msra.mxu0 %v1077
        %1261 = vmatprep.subr.mxu0 0.0
        %1262 = vmatpush1.msra.mxu0 %v1078
        %1263 = vmatprep.subr.mxu0 0.0
        %1264 = vmatpush1.msra.mxu0 %v1079
        %1265 = vmatprep.subr.mxu0 0.0
        %1266 = vmatpush1.msra.mxu0 %v1080
        %1267 = vmatprep.subr.mxu0 0.0
        %1268 = vmatpush1.msra.mxu0 %v1081
        %1269 = vmatprep.subr.mxu0 0.0
        %1270 = vmatpush1.msra.mxu0 %v1082
        %1271 = vmatprep.subr.mxu0 0.0
        %1272 = vmatpush1.msra.mxu0 %v1083
        %1273 = vmatprep.subr.mxu0 0.0
        %1274 = vmatpush1.msra.mxu0 %v1251
        %1275 = vmatprep.subr.mxu0 0.0
        %1276 = vmatpush1.msra.mxu0 0.0
        %1277 = vmatprep.subr.mxu0 0.0
        %1278 = vmatpush1.msra.mxu0 0.0
        %1279 = vmatprep.subr.mxu0 0.0
        %1280 = vmatpush1.msra.mxu0 0.0
        %1281 = vmatprep.subr.mxu0 0.0
        %1282 = vmatpush1.msra.mxu0 0.0
        %1283 = vmatprep.subr.mxu0 0.0
        %1284 = vmatpush1.msra.mxu0 0.0
        %1285 = vmatprep.subr.mxu0 0.0
        %1286 = vmatpush1.msra.mxu0 0.0
        %1287 = vmatprep.subr.mxu0 0.0
        %1288 = vmatpush1.msra.mxu0 0.0
        %1289 = vmatprep.subr.mxu0 0.0
        %1290 = vmatpush1.msra.mxu0 0.0
        %1291 = vmatprep.subr.mxu0 0.0
        %1292 = vmatpush1.msra.mxu0 0.0
        %1293 = vmatprep.subr.mxu0 0.0
        %1294 = vmatpush1.msra.mxu0 0.0
        %1295 = vmatprep.subr.mxu0 0.0
        %1296 = vmatpush1.msra.mxu0 0.0
        %1297 = vmatprep.subr.mxu0 0.0
        %1298 = vmatpush1.msra.mxu0 0.0
        %1299 = vmatprep.subr.mxu0 0.0
        %1300 = vmatpush1.msra.mxu0 0.0
        %1301 = vmatprep.subr.mxu0 0.0
        %1302 = vmatpush1.msra.mxu0 0.0
        %1303 = vmatprep.subr.mxu0 0.0
        %1304 = vmatpush1.msra.mxu0 0.0
        %1305 = vmatprep.subr.mxu0 0.0
        %1306 = vmatpush1.msra.mxu0 0.0
        %1307 = vmatprep.subr.mxu0 0.0
        %1308 = vmatpush1.msra.mxu0 0.0
        %1309 = vmatprep.subr.mxu0 0.0
        %1310 = vmatpush1.msra.mxu0 0.0
        %1311 = vmatprep.subr.mxu0 0.0
        %1312 = vmatpush1.msra.mxu0 0.0
        %1313 = vmatprep.subr.mxu0 0.0
        %1314 = vmatpush1.msra.mxu0 0.0
        %1315 = vmatprep.subr.mxu0 0.0
        %1316 = vmatpush1.msra.mxu0 0.0
        %1317 = vmatprep.mubr.f32.mxu0 0.0
        %1318 = vmatmul.mubr.f32.gmra.mrb[0].mxu0 %v1246
        %v1319 = vpop.f32.mrb[0].mxu0
        %v1320 = vadd.f32 %v1208, %v1319
        %v1321 = vpop.f32.mrb[0].mxu0
        %1322 = vmatprep.mubr.f32.mxu0 0.0
        %1323 = vmatmul.mubr.f32.gmra.mrb[0].mxu0 %v1248
        %v1324 = vpop.f32.mrb[0].mxu0
        %v1325 = vadd.f32 %v1213, %v1324
        %v1326 = vpop.f32.mrb[0].mxu0
        %1327 = vdwg.mxu0
        %v1328 = vld [vmem:[%s7] sm:$0x1]
        %v1330 = vlaneseq
        %v1331 = vshrl.u32 %v1330, 7
        %v1332 = vsub.s32 0, %v1331
        %v1333 = vrot.slane %v1328, %v1332
        %v1335 = vadd.f32 %v1320, %v1333
        %v1336 = vadd.f32 %v1325, %v1333
        %vm1337 = vcmask 48128
        %1338 = vst.msk [vmem:[%s331] sm:$0xff] %vm1337, %v1335
        %1339 = vst.msk [vmem:[%s331 + $0x8] sm:$0xff] %vm1337, %v1336
        %s1340 = smul.u32 2, %s26
        %p1341 = scmp.lt.s32.totalorder %s1340, 3
        %s1342 = scalar_select %p1341, %s1340, 3
        %s1343 = smul.addr %s1342, 8
        %s1344 = scalar_lea.vmem %s8, %s1343
        // Predicated region
        $region57: #{tpu_custom_call.1} parent=51 // pred_check
          %p1345 = pneg %p217
        $region58: #{tpu_custom_call.1} parent=51 // pred_check_branch
          %1347 = sbr.rel (%p1345) target = $region60
        $region59: #{tpu_custom_call.1} parent=51 // pred_region
          %s1348 = smul.u32 2, %s26
        $region60: #{tpu_custom_call.1} parent=51 // pred_fallthru
          _
      $region52: #{tpu_custom_call.1} parent=5 // pred_fallthru
        _
      %p1349 = scmp.le.s32.totalorder 2, %s21
      // Predicated region
      $region61: #{tpu_custom_call.1} parent=5 // pred_check
        %p1350 = pneg %p1349
      $region62: #{tpu_custom_call.1} parent=5 // pred_check_branch
        %1352 = sbr.rel (%p1350) target = $region64
      $region63: #{tpu_custom_call.1} parent=5 // pred_region
        %s1353 = ssub.s32 %s21, 2
        // Predicated region
        $region65: #{tpu_custom_call.1} parent=63 // pred_check
          %p1354 = pneg %p223
        $region66: #{tpu_custom_call.1} parent=63 // pred_check_branch
          %1356 = sbr.rel (%p1354) target = $region68
        $region67: #{tpu_custom_call.1} parent=63 // pred_region
          %s1357 = smul.u32 2, %s27
          %p1358 = scmp.lt.s32.totalorder %s1357, 3
          %s1359 = scalar_select %p1358, %s1357, 3
          %s1360 = smul.addr %s1359, 8
          %s1361 = scalar_lea.vmem %s8, %s1360
        $region68: #{tpu_custom_call.1} parent=63 // pred_fallthru
          _
      $region64: #{tpu_custom_call.1} parent=5 // pred_fallthru
        _
    $region6: #{tpu_custom_call.1} parent=1 // loop_footer
      %s25 = sadd.s32 1, %s21
    $region7: #{tpu_custom_call.1} parent=1 // loop_footer_branch
      %20 = sbr.rel target = $region3
    $region8: #{tpu_custom_call.1} parent=1 // loop_exit
      _
    %1362 = vsyncpa [#allocation5], 1
    %s1363 = scalar_lea.sflag [#allocation5], 1
    %1364 = vsyncpa %s1363, 1

</llo_original>
